<compile_context>
chip_gen: v7x
topology: tpu7x:2x2x1
jax: 0.10.0
libtpu: 0.0.40
codegen_flags: <defaults>
</compile_context>

<pallas_src>
import jax
import jax.numpy as jnp
from jax.experimental import pallas as pl
from jax.experimental.pallas import tpu as pltpu


def _round_up(x, m):
    return ((x + m - 1) // m) * m


def _linear_kernel(x_ref, w_ref, b_ref, o_ref):
    # x_ref: (TM, D) tile of gathered word-embedding rows
    # w_ref: (D, H)  orig_linear weight, already in x @ W + b orientation
    # b_ref: (1, H)  bias (f32; epilogue stays f32 even with bf16 MXU inputs)
    # o_ref: (TM, H) output tile (H multiple of 128 -> lane-dense stores;
    #        ragged final block stores are masked by Pallas)
    acc = jnp.dot(x_ref[...], w_ref[...], preferred_element_type=jnp.float32)
    o_ref[...] = (acc + b_ref[...]).astype(o_ref.dtype)


def combined_base_forward(word_ids, ent_ids, word_table, ent_table, W, b,
                          *, tm=1024, mxu_dtype=None, out_dtype=jnp.float32,
                          min_pallas_tokens=512, vmem_limit_bytes=None):
    """word_ids/ent_ids: (N,) int32; word_table: (Vw, D); ent_table: (Ve, De);
       W: (D, H); b: (H,). Returns (proj (N, H) out_dtype, ent_vecs (N, De)).

       tm                : max tokens per grid step (multiple of 8; auto-shrunk
                           so the grid has >= 2 blocks for megacore sharding).
       mxu_dtype         : optional dtype (e.g. jnp.bfloat16) for the matmul
                           operands; accumulation stays f32. Valid on v5e too.
       out_dtype         : projection output dtype (bf16 halves writeback).
       min_pallas_tokens : below this N, use plain XLA (launch cost dominates).
    """
    N = word_ids.shape[0]
    _, D = word_table.shape
    H = W.shape[1]

    # Dense embedding gathers (XLA gather). The entity path is a pure
    # gather-copy, so it never enters the Pallas kernel. The word gather is
    # exposed to input fusion below so the (N, D) slab need not round-trip HBM.
    x = jnp.take(word_table, word_ids, axis=0)          # (N, D)
    ent_vecs = jnp.take(ent_table, ent_ids, axis=0)     # (N, De)

    if N < min_pallas_tokens:
        # Tiny problem: Pallas fixed launch + pipeline prologue dominates.
        proj = (x.astype(jnp.float32) @ W.astype(jnp.float32)
                + b[None, :].astype(jnp.float32)).astype(out_dtype)
        return proj, ent_vecs

    w = W
    if mxu_dtype is not None:
        # Only worthwhile because the cast can fuse with the gather into the
        # kernel's input stream (allow_input_fusion) instead of materialising.
        x = x.astype(mxu_dtype)
        w = w.astype(mxu_dtype)
    b2 = b.reshape(1, H).astype(jnp.float32)

    # Tile selection: as large as requested, but always >= 2 blocks so both
    # v7x TensorCores get work; keep 8-sublane (here 256) alignment.
    tm_eff = max(8, min(tm, _round_up(pl.cdiv(N, 2), 256)))
    n_blocks = pl.cdiv(N, tm_eff)   # ragged last block handled by masking

    x_item = jnp.dtype(x.dtype).itemsize
    w_item = jnp.dtype(w.dtype).itemsize
    o_item = jnp.dtype(out_dtype).itemsize
    cost = pl.CostEstimate(
        flops=2 * N * D * H,
        transcendentals=0,
        bytes_accessed=(N * D * x_item      # activations in
                        + D * H * w_item    # weight in
                        + H * 4             # bias in
                        + N * H * o_item),  # proj out
    )

    grid_spec = pltpu.PrefetchScalarGridSpec(
        num_scalar_prefetch=0,
        grid=(n_blocks,),
        in_specs=[
            # (TM, D) tile of gathered word-embedding rows for this step
            pl.BlockSpec((tm_eff, D), lambda i: (i, 0)),
            # full linear weight, resident across the grid
            pl.BlockSpec((D, H), lambda i: (0, 0)),
            # bias (full extent on the sublane dim)
            pl.BlockSpec((1, H), lambda i: (0, 0)),
        ],
        out_specs=pl.BlockSpec((tm_eff, H), lambda i: (i, 0)),
    )

    proj = pl.pallas_call(
        _linear_kernel,
        out_shape=jax.ShapeDtypeStruct((N, H), out_dtype),
        grid_spec=grid_spec,
        compiler_params=pltpu.CompilerParams(
            dimension_semantics=("parallel",),
            # Let XLA fuse the gather/cast producing `x` into the input
            # pipeline (removes a full HBM pass of the activation slab).
            allow_input_fusion=[True, False, False],
            vmem_limit_bytes=vmem_limit_bytes,
        ),
        cost_estimate=cost,
    )(x, w, b2)

    return proj, ent_vecs


if __name__ == "__main__":
    key = jax.random.PRNGKey(0)
    k_w, k_e, k_W, k_b, k_wid, k_eid = jax.random.split(key, 6)

    # Small, deterministic "checkpoint" (shapes implied by the module __init__).
    VOCAB_W, VOCAB_E = 50, 30
    D = 128          # word / entity embedding dim (lane-aligned)
    H = 128          # orig_linear output dim: W is (in=D, out=H), bias (H,)

    word_table = jax.random.normal(k_w, (VOCAB_W, D), dtype=jnp.float32)
    ent_table = jax.random.normal(k_e, (VOCAB_E, D), dtype=jnp.float32)
    # padding_idx=0 row: bake the zero row in, matching nn.Embedding(padding_idx=0).
    word_table = word_table.at[0].set(0.0)
    ent_table = ent_table.at[0].set(0.0)

    W = jax.random.normal(k_W, (D, H), dtype=jnp.float32) * 0.05
    b = jax.random.normal(k_b, (H,), dtype=jnp.float32) * 0.05

    # --- Pallas fast path: multi-block grid with a ragged final block --------
    N = 2500   # 3 blocks at tm=1024: 1024 + 1024 + 452 (masked boundary stores)
    word_ids = jax.random.randint(k_wid, (N,), 0, VOCAB_W, dtype=jnp.int32)
    ent_ids = jax.random.randint(k_eid, (N,), 0, VOCAB_E, dtype=jnp.int32)
    # make sure some padding indices (0) are exercised
    word_ids = word_ids.at[0].set(0)
    ent_ids = ent_ids.at[1].set(0)

    # Plain-JAX reference (embedding lookup + x @ W + b).
    ref_proj = word_table[word_ids] @ W + b[None, :]
    ref_ent = ent_table[ent_ids]

    proj, ent_vecs = combined_base_forward(
        word_ids, ent_ids, word_table, ent_table, W, b, tm=1024)
    proj = jax.block_until_ready(proj)
    ent_vecs = jax.block_until_ready(ent_vecs)

    assert proj.shape == (N, H) and ent_vecs.shape == (N, D)
    assert jnp.allclose(proj, ref_proj, atol=1e-5, rtol=1e-5)
    assert jnp.allclose(ent_vecs, ref_ent, atol=1e-6, rtol=1e-6)

    # --- bf16 MXU inputs + bf16 output, f32 accumulation (all generations) ---
    proj_bf16, _ = combined_base_forward(
        word_ids, ent_ids, word_table, ent_table, W, b,
        tm=1024, mxu_dtype=jnp.bfloat16, out_dtype=jnp.bfloat16)
    proj_bf16 = jax.block_until_ready(proj_bf16)
    assert proj_bf16.dtype == jnp.bfloat16
    assert jnp.allclose(proj_bf16.astype(jnp.float32), ref_proj,
                        atol=5e-2, rtol=5e-2)

    # --- tiny batch (batch=2, seq=8) goes through the plain-XLA fallback -----
    Ns = 16
    wid_s = jax.random.randint(jax.random.PRNGKey(1), (Ns,), 0, VOCAB_W,
                               dtype=jnp.int32)
    eid_s = jax.random.randint(jax.random.PRNGKey(2), (Ns,), 0, VOCAB_E,
                               dtype=jnp.int32)
    proj_s, ent_s = combined_base_forward(
        wid_s, eid_s, word_table, ent_table, W, b)
    proj_s = jax.block_until_ready(proj_s)
    assert proj_s.shape == (Ns, H)
    assert jnp.allclose(proj_s, word_table[wid_s] @ W + b[None, :],
                        atol=1e-5, rtol=1e-5)
    assert jnp.allclose(ent_s, ent_table[eid_s], atol=1e-6, rtol=1e-6)

    print("KERNEL_OK")
</pallas_src>

<mosaic_0001>
module attributes {stable_mosaic.version = 11 : i64} {
  func.func @_linear_kernel(%arg0: i32, %arg1: memref<1024x128xf32, #tpu.memory_space<vmem>>, %arg2: memref<128x128xf32, #tpu.memory_space<vmem>>, %arg3: memref<1x128xf32, #tpu.memory_space<vmem>>, %arg4: memref<1024x128xf32, #tpu.memory_space<vmem>>) attributes {dimension_semantics = [#tpu.dimension_semantics<parallel>], iteration_bounds = array<i64: 3>, scalar_prefetch = 0 : i64, scratch_operands = 0 : i64, tpu.core_type = #tpu.core_type<tc>, window_params = [{transform_indices = @transform_0, window_bounds = array<i64: 1024, 128>}, {pipeline_mode = #tpu.pipeline_mode<synchronous>, transform_indices = @transform_1, window_bounds = array<i64: 128, 128>}, {pipeline_mode = #tpu.pipeline_mode<synchronous>, transform_indices = @transform_2, window_bounds = array<i64: 1, 128>}, {transform_indices = @transform_3, window_bounds = array<i64: 1024, 128>}]} {
    %c0 = arith.constant 0 : index
    %c0_0 = arith.constant 0 : index
    %0 = vector.load %arg1[%c0, %c0_0] : memref<1024x128xf32, #tpu.memory_space<vmem>>, vector<1024x128xf32>
    %c0_1 = arith.constant 0 : index
    %c0_2 = arith.constant 0 : index
    %1 = vector.load %arg2[%c0_1, %c0_2] : memref<128x128xf32, #tpu.memory_space<vmem>>, vector<128x128xf32>
    %cst = arith.constant dense<0.000000e+00> : vector<1024x128xf32>
    %2 = tpu.matmul %0, %1, %cst {dimension_numbers = #tpu.dot_dimension_numbers<[1], [0], [0], [1], [0, 0, 1, 1], [], []>} : vector<1024x128xf32>, vector<128x128xf32>, vector<1024x128xf32> -> vector<1024x128xf32>
    %c0_3 = arith.constant 0 : index
    %c0_4 = arith.constant 0 : index
    %3 = vector.load %arg3[%c0_3, %c0_4] : memref<1x128xf32, #tpu.memory_space<vmem>>, vector<1x128xf32>
    %4 = vector.broadcast %3 : vector<1x128xf32> to vector<1024x128xf32>
    %5 = arith.addf %2, %4 : vector<1024x128xf32>
    %c0_5 = arith.constant 0 : index
    %c0_6 = arith.constant 0 : index
    %6 = vector.load %arg4[%c0_5, %c0_6] : memref<1024x128xf32, #tpu.memory_space<vmem>>, vector<1024x128xf32>
    tpu.vector_store %arg4[%c0_5, %c0_6], %5 {strides = array<i32>} : memref<1024x128xf32, #tpu.memory_space<vmem>>, vector<1024x128xf32>,
    return
  }
  func.func @transform_0(%arg0: i32) -> (i32, i32) {
    %c0_i32 = arith.constant 0 : i32
    %c0_i32_0 = arith.constant 0 : i32
    return %arg0, %c0_i32 : i32, i32
  }
  func.func @transform_1(%arg0: i32) -> (i32, i32) {
    %c0_i32 = arith.constant 0 : i32
    %c0_i32_0 = arith.constant 0 : i32
    %c0_i32_1 = arith.constant 0 : i32
    return %c0_i32, %c0_i32_0 : i32, i32
  }
  func.func @transform_2(%arg0: i32) -> (i32, i32) {
    %c0_i32 = arith.constant 0 : i32
    %c0_i32_0 = arith.constant 0 : i32
    %c0_i32_1 = arith.constant 0 : i32
    return %c0_i32, %c0_i32_0 : i32, i32
  }
  func.func @transform_3(%arg0: i32) -> (i32, i32) {
    %c0_i32 = arith.constant 0 : i32
    %c0_i32_0 = arith.constant 0 : i32
    return %arg0, %c0_i32 : i32, i32
  }
}

</mosaic_0001>

<llo_original>
// kernel: tpu_custom_call.1
$region0: #{tpu_custom_call.1}
  #allocation0 [shape = 'u32[]', space=smem, size = 0x4, offset = 0x4, fixed_abs, tag = 'smem constant byte address 0x4 - core index']
  #allocation1 [shape = 'u32[144,128]{1,0:T(1,128)}', space=vmem, size = 0x12000, scoped, tag = 'internal scratch']
  %s0 = inlined_call_operand.hbm [shape: f32[2500,128], index: 0, kind: input, shape index: {}]
  %s1 = inlined_call_operand.hbm [shape: f32[128,128], index: 1, kind: input, shape index: {}]
  %s2 = inlined_call_operand.hbm [shape: f32[1,128], index: 2, kind: input, shape index: {}]
  %s3 = inlined_call_operand.hbm [shape: f32[2500,128], index: 3, kind: output, shape index: {}]
  %s4 = sld [smem:[#allocation0]]
  $region57: #{tpu_custom_call.1} parent=0
    _
  %s6 = ssub.s32 1, %s4
  %s7 = scalar_select 0, %s6, %s4
  $region1: #{tpu_custom_call.1} parent=0
    #allocation2 [shape = 'u8[1048576]{0}', space=vmem, size = 0x100000, scoped, tag = 'input window, operand 0']
    #allocation3 [shape = 's32[2]{0}', space=sflag, size = 0x8, scoped, tag = 'scoped memory for tpu_custom_call.1']
    #allocation4 [shape = 's32[2]{0}', space=sflag, size = 0x8, scoped, tag = 'scoped memory for tpu_custom_call.1']
    #allocation5 [shape = 'u8[65536]{0}', space=vmem, size = 0x10000, scoped, tag = 'input window, operand 1, single buffered']
    #allocation6 [shape = 's32[1]{0}', space=sflag, size = 0x4, scoped, tag = 'scoped memory for tpu_custom_call.1']
    #allocation7 [shape = 'u8[512]{0}', space=vmem, size = 0x400, scoped, tag = 'input window, operand 2, single buffered']
    #allocation8 [shape = 'u8[1048576]{0}', space=vmem, size = 0x100000, scoped, tag = 'output window, operand 0']
    %8 = vsyncpa [#allocation3], 0
    %s9 = scalar_lea.sflag [#allocation3], 1
    %10 = vsyncpa %s9, 0
    %11 = vsyncpa [#allocation6], 0
    %12 = vsyncpa [#allocation4], 0
    %s13 = scalar_lea.sflag [#allocation4], 1
    %14 = vsyncpa %s13, 0
    loop: start=0, step=1, limit=5
    $region2: #{tpu_custom_call.1} parent=1 // loop_pre_header
      _
    $region3: #{tpu_custom_call.1} parent=1 // loop_header
      %s16 = sphi 0, %s20
      %p17 = scmp.ge.s32.totalorder %s16, 5
      %s26 = sphi 0, %s28
      %s29 = sphi 0, %s26
      %s30 = sphi 0, %s29
      %s46 = sphi 0, %s30
      %s50 = sphi 0, %s50
      %s52 = sphi 0, %s50
      %s53 = sphi 0, %s52
      %s67 = sphi 0, %s53
      %s71 = sphi 0, %s71
      %s73 = sphi 0, %s71
      %s74 = sphi 0, %s73
      %s88 = sphi 0, %s74
      %s94 = sphi 0, %s96
      %s97 = sphi 0, %s94
      %s98 = sphi 0, %s97
      %s114 = sphi 0, %s98
    $region4: #{tpu_custom_call.1} parent=1 // loop_header_branch
      %19 = sbr.rel (%p17) target = $region8
    $region5: #{tpu_custom_call.1} parent=1 // loop_body
      %s21 = ssub.s32 %s16, 1
      %s22 = ssub.s32 %s16, 2
      %s23 = sadd.s32 %s16, 1
      %s24 = ssub.s32 %s16, %s23
      %p25 = scmp.eq.s32.totalorder %s24, 0
      %s27 = sadd.s32 %s26, 1
      %s28 = scalar_select %p25, %s26, %s27
      %p31 = pneg %p25
      %p32 = scmp.eq.s32.totalorder %s16, 2
      %p33 = por %p31, %p32
      %p34 = scmp.ne.s32.totalorder %s26, %s29
      %p35 = scmp.eq.s32.totalorder %s16, 0
      %p36 = por %p34, %p35
      %p37 = scmp.ne.s32.totalorder %s26, %s29
      %p38 = scmp.eq.s32.totalorder %s21, 2
      %p39 = por %p37, %p38
      %p40 = scmp.ne.s32.totalorder %s29, %s30
      %p41 = scmp.eq.s32.totalorder %s21, 0
      %p42 = por %p40, %p41
      %p43 = scmp.ne.s32.totalorder %s29, %s30
      %p44 = scmp.eq.s32.totalorder %s22, 2
      %p45 = por %p43, %p44
      %p47 = scmp.ne.s32.totalorder %s30, %s46
      %p48 = scmp.eq.s32.totalorder %s22, 0
      %p49 = por %p47, %p48
      %s51 = sadd.s32 %s50, 1
      %p54 = scmp.eq.s32.totalorder %s16, 2
      %p55 = scmp.ne.s32.totalorder %s50, %s52
      %p56 = scmp.eq.s32.totalorder %s16, 0
      %p57 = por %p55, %p56
      %p58 = scmp.ne.s32.totalorder %s50, %s52
      %p59 = scmp.eq.s32.totalorder %s21, 2
      %p60 = por %p58, %p59
      %p61 = scmp.ne.s32.totalorder %s52, %s53
      %p62 = scmp.eq.s32.totalorder %s21, 0
      %p63 = por %p61, %p62
      %p64 = scmp.ne.s32.totalorder %s52, %s53
      %p65 = scmp.eq.s32.totalorder %s22, 2
      %p66 = por %p64, %p65
      %p68 = scmp.ne.s32.totalorder %s53, %s67
      %p69 = scmp.eq.s32.totalorder %s22, 0
      %p70 = por %p68, %p69
      %s72 = sadd.s32 %s71, 1
      %p75 = scmp.eq.s32.totalorder %s16, 2
      %p76 = scmp.ne.s32.totalorder %s71, %s73
      %p77 = scmp.eq.s32.totalorder %s16, 0
      %p78 = por %p76, %p77
      %p79 = scmp.ne.s32.totalorder %s71, %s73
      %p80 = scmp.eq.s32.totalorder %s21, 2
      %p81 = por %p79, %p80
      %p82 = scmp.ne.s32.totalorder %s73, %s74
      %p83 = scmp.eq.s32.totalorder %s21, 0
      %p84 = por %p82, %p83
      %p85 = scmp.ne.s32.totalorder %s73, %s74
      %p86 = scmp.eq.s32.totalorder %s22, 2
      %p87 = por %p85, %p86
      %p89 = scmp.ne.s32.totalorder %s74, %s88
      %p90 = scmp.eq.s32.totalorder %s22, 0
      %p91 = por %p89, %p90
      %s92 = ssub.s32 %s16, %s23
      %p93 = scmp.eq.s32.totalorder %s92, 0
      %s95 = sadd.s32 %s94, 1
      %s96 = scalar_select %p93, %s94, %s95
      %p99 = pneg %p93
      %p100 = scmp.eq.s32.totalorder %s16, 2
      %p101 = por %p99, %p100
      %p102 = scmp.ne.s32.totalorder %s94, %s97
      %p103 = scmp.eq.s32.totalorder %s16, 0
      %p104 = por %p102, %p103
      %p105 = scmp.ne.s32.totalorder %s94, %s97
      %p106 = scmp.eq.s32.totalorder %s21, 2
      %p107 = por %p105, %p106
      %p108 = scmp.ne.s32.totalorder %s97, %s98
      %p109 = scmp.eq.s32.totalorder %s21, 0
      %p110 = por %p108, %p109
      %p111 = scmp.ne.s32.totalorder %s97, %s98
      %p112 = scmp.eq.s32.totalorder %s22, 2
      %p113 = por %p111, %p112
      %p115 = scmp.ne.s32.totalorder %s98, %s114
      %p116 = scmp.eq.s32.totalorder %s22, 0
      %p117 = por %p115, %p116
      %p118 = scmp.le.s32.totalorder 1, %s16
      %p119 = scmp.lt.s32.totalorder %s16, 4
      %p120 = pnand %p118, %p119
      %p121 = pneg %p120
      // Predicated region
      $region9: #{tpu_custom_call.1} parent=5 // pred_check
        _
      $region10: #{tpu_custom_call.1} parent=5 // pred_check_branch
        %123 = sbr.rel (%p120) target = $region12
      $region11: #{tpu_custom_call.1} parent=5 // pred_region
        %s124 = ssub.s32 %s16, 1
        // Predicated region
        $region13: #{tpu_custom_call.1} parent=11 // pred_check
          %p125 = pneg %p63
        $region14: #{tpu_custom_call.1} parent=11 // pred_check_branch
          %127 = sbr.rel (%p125) target = $region16
        $region15: #{tpu_custom_call.1} parent=11 // pred_region
          %s129 = ssub.s32 2048, 2048
          %130 = vsyncadd [#allocation6], %s129
          %s131 = sshll.u32 [#allocation5], 4
          %s132 = int_to_ptr.vmem [resolvable:$true] %s131
          %137 = dma.hbm_to_vmem [thread:$0]  %s1, 2048, %s132, [#allocation6], 128, 128, 8
        $region16: #{tpu_custom_call.1} parent=11 // pred_fallthru
          _
        // Predicated region
        $region17: #{tpu_custom_call.1} parent=11 // pred_check
          %p138 = pneg %p84
        $region18: #{tpu_custom_call.1} parent=11 // pred_check_branch
          %140 = sbr.rel (%p138) target = $region20
        $region19: #{tpu_custom_call.1} parent=11 // pred_region
          %s142 = ssub.s32 16, 16
          %143 = vsyncadd [#allocation6], %s142
          %s145 = sshll.u32 [#allocation7], 4
          %s146 = int_to_ptr.vmem [resolvable:$true] %s145
          %148 = dma.hbm_to_vmem [thread:$0]  %s2, 16, %s146, [#allocation6]
        $region20: #{tpu_custom_call.1} parent=11 // pred_fallthru
          _
      $region12: #{tpu_custom_call.1} parent=5 // pred_fallthru
        _
      %p149 = scmp.lt.s32.totalorder %s16, 3
      // Predicated region
      $region21: #{tpu_custom_call.1} parent=5 // pred_check
        %p150 = pneg %p149
      $region22: #{tpu_custom_call.1} parent=5 // pred_check_branch
        %152 = sbr.rel (%p150) target = $region24
      $region23: #{tpu_custom_call.1} parent=5 // pred_region
        // Predicated region
        $region25: #{tpu_custom_call.1} parent=23 // pred_check
          %p153 = pneg %p36
        $region26: #{tpu_custom_call.1} parent=23 // pred_check_branch
          %155 = sbr.rel (%p153) target = $region28
        $region27: #{tpu_custom_call.1} parent=23 // pred_region
          %s156 = sand.u32 %s26, 1
          %s157 = scalar_lea.sflag [#allocation3], %s156
          %s158 = sand.u32 %s26, 1
          %s159 = smul.addr %s158, 1024
          %s160 = scalar_lea.vmem [#allocation2], %s159
          %s161 = smul.u32 128, %s16
          %s162 = ssub.s32 313, %s161
          %p163 = scmp.lt.s32.totalorder %s162, 128
          %s164 = scalar_select %p163, %s162, 128
          %s165 = smul.u32 128, %s164
          %s167 = ssub.s32 16384, %s165
          %168 = vsyncadd %s157, %s167
          %p169 = scmp.ne.s32.totalorder 0, %s165
          %s170 = smul.addr %s161, 128
          %s171 = scalar_lea.hbm %s0, %s170
          %s172 = smul.u32 8, %s164
          %s173 = sshll.u32 %s160, 4
          %s174 = int_to_ptr.vmem [resolvable:$true] %s173
          %s175 = sshll.u32 %s172, 4
          %179 = dma.hbm_to_vmem [thread:$0]  (%p169), %s171, %s175, %s174, %s157, 128, 128, 8
        $region28: #{tpu_custom_call.1} parent=23 // pred_fallthru
          _
      $region24: #{tpu_custom_call.1} parent=5 // pred_fallthru
        _
      %p180 = scmp.le.s32.totalorder 1, %s16
      %p181 = scmp.lt.s32.totalorder %s16, 4
      %p182 = pnand %p180, %p181
      %p183 = pneg %p182
      // Predicated region
      $region29: #{tpu_custom_call.1} parent=5 // pred_check
        _
      $region30: #{tpu_custom_call.1} parent=5 // pred_check_branch
        %185 = sbr.rel (%p182) target = $region32
      $region31: #{tpu_custom_call.1} parent=5 // pred_region
        %s186 = ssub.s32 %s16, 1
        %s187 = sand.u32 %s29, 1
        %s188 = scalar_lea.sflag [#allocation3], %s187
        %s189 = sand.u32 %s29, 1
        %s190 = smul.addr %s189, 1024
        %s191 = scalar_lea.vmem [#allocation2], %s190
        // Predicated region
        $region33: #{tpu_custom_call.1} parent=31 // pred_check
          %p192 = pneg %p42
        $region34: #{tpu_custom_call.1} parent=31 // pred_check_branch
          %194 = sbr.rel (%p192) target = $region36
        $region35: #{tpu_custom_call.1} parent=31 // pred_region
          %195 = dma.done %s188, 16384
        $region36: #{tpu_custom_call.1} parent=31 // pred_fallthru
          _
        // Predicated region
        $region37: #{tpu_custom_call.1} parent=31 // pred_check
          %p196 = pneg %p63
        $region38: #{tpu_custom_call.1} parent=31 // pred_check_branch
          %198 = sbr.rel (%p196) target = $region40
        $region39: #{tpu_custom_call.1} parent=31 // pred_region
          %199 = dma.done [#allocation6], 2048
        $region40: #{tpu_custom_call.1} parent=31 // pred_fallthru
          _
        // Predicated region
        $region41: #{tpu_custom_call.1} parent=31 // pred_check
          %p200 = pneg %p84
        $region42: #{tpu_custom_call.1} parent=31 // pred_check_branch
          %202 = sbr.rel (%p200) target = $region44
        $region43: #{tpu_custom_call.1} parent=31 // pred_region
          %203 = dma.done [#allocation6], 16
        $region44: #{tpu_custom_call.1} parent=31 // pred_fallthru
          _
        %s204 = sand.u32 %s29, 1
        %s205 = scalar_lea.sflag [#allocation3], %s204
        %s206 = sand.u32 %s29, 1
        %s207 = smul.addr %s206, 1024
        %s208 = scalar_lea.vmem [#allocation2], %s207
        %p209 = pneg %p42
        %p210 = pneg %p39
        %p211 = pneg %p63
        %p212 = pneg %p60
        %p213 = pneg %p84
        %p214 = pneg %p81
        %p215 = pneg %p110
        %p216 = pneg %p107
        %s217 = sand.u32 %s97, 1
        %s218 = scalar_lea.sflag [#allocation4], %s217
        %s219 = sand.u32 %s97, 1
        %s220 = smul.addr %s219, 1024
        %s221 = scalar_lea.vmem [#allocation8], %s220
        %s222 = smul.u32 128, %s21
        %s223 = ssub.s32 313, %s222
        %p224 = scmp.lt.s32.totalorder %s223, 128
        %s225 = scalar_select %p224, %s223, 128
        %s226 = smul.u32 128, %s225
        %s227 = smul.u32 128, %s21
        %s228 = ssub.s32 313, %s227
        %p229 = scmp.lt.s32.totalorder %s228, 128
        %s230 = scalar_select %p229, %s228, 128
        %s231 = smul.u32 128, %s230
        %v232 = vld [vmem:[%s191] sm:$0xff]
        %v233 = vld [vmem:[%s191 + $0x8] sm:$0xff]
        %v234 = vld [vmem:[%s191 + $0x10] sm:$0xff]
        %v235 = vld [vmem:[%s191 + $0x18] sm:$0xff]
        %v236 = vld [vmem:[%s191 + $0x20] sm:$0xff]
        %v237 = vld [vmem:[%s191 + $0x28] sm:$0xff]
        %v238 = vld [vmem:[%s191 + $0x30] sm:$0xff]
        %v239 = vld [vmem:[%s191 + $0x38] sm:$0xff]
        %v240 = vld [vmem:[%s191 + $0x40] sm:$0xff]
        %v241 = vld [vmem:[%s191 + $0x48] sm:$0xff]
        %v242 = vld [vmem:[%s191 + $0x50] sm:$0xff]
        %v243 = vld [vmem:[%s191 + $0x58] sm:$0xff]
        %v244 = vld [vmem:[%s191 + $0x60] sm:$0xff]
        %v245 = vld [vmem:[%s191 + $0x68] sm:$0xff]
        %v246 = vld [vmem:[%s191 + $0x70] sm:$0xff]
        %v247 = vld [vmem:[%s191 + $0x78] sm:$0xff]
        %v248 = vld [vmem:[%s191 + $0x80] sm:$0xff]
        %v249 = vld [vmem:[%s191 + $0x88] sm:$0xff]
        %v250 = vld [vmem:[%s191 + $0x90] sm:$0xff]
        %v251 = vld [vmem:[%s191 + $0x98] sm:$0xff]
        %v252 = vld [vmem:[%s191 + $0xa0] sm:$0xff]
        %v253 = vld [vmem:[%s191 + $0xa8] sm:$0xff]
        %v254 = vld [vmem:[%s191 + $0xb0] sm:$0xff]
        %v255 = vld [vmem:[%s191 + $0xb8] sm:$0xff]
        %v256 = vld [vmem:[%s191 + $0xc0] sm:$0xff]
        %v257 = vld [vmem:[%s191 + $0xc8] sm:$0xff]
        %v258 = vld [vmem:[%s191 + $0xd0] sm:$0xff]
        %v259 = vld [vmem:[%s191 + $0xd8] sm:$0xff]
        %v260 = vld [vmem:[%s191 + $0xe0] sm:$0xff]
        %v261 = vld [vmem:[%s191 + $0xe8] sm:$0xff]
        %v262 = vld [vmem:[%s191 + $0xf0] sm:$0xff]
        %v263 = vld [vmem:[%s191 + $0xf8] sm:$0xff]
        %v264 = vld [vmem:[%s191 + $0x100] sm:$0xff]
        %v265 = vld [vmem:[%s191 + $0x108] sm:$0xff]
        %v266 = vld [vmem:[%s191 + $0x110] sm:$0xff]
        %v267 = vld [vmem:[%s191 + $0x118] sm:$0xff]
        %v268 = vld [vmem:[%s191 + $0x120] sm:$0xff]
        %v269 = vld [vmem:[%s191 + $0x128] sm:$0xff]
        %v270 = vld [vmem:[%s191 + $0x130] sm:$0xff]
        %v271 = vld [vmem:[%s191 + $0x138] sm:$0xff]
        %v272 = vld [vmem:[%s191 + $0x140] sm:$0xff]
        %v273 = vld [vmem:[%s191 + $0x148] sm:$0xff]
        %v274 = vld [vmem:[%s191 + $0x150] sm:$0xff]
        %v275 = vld [vmem:[%s191 + $0x158] sm:$0xff]
        %v276 = vld [vmem:[%s191 + $0x160] sm:$0xff]
        %v277 = vld [vmem:[%s191 + $0x168] sm:$0xff]
        %v278 = vld [vmem:[%s191 + $0x170] sm:$0xff]
        %v279 = vld [vmem:[%s191 + $0x178] sm:$0xff]
        %v280 = vld [vmem:[%s191 + $0x180] sm:$0xff]
        %v281 = vld [vmem:[%s191 + $0x188] sm:$0xff]
        %v282 = vld [vmem:[%s191 + $0x190] sm:$0xff]
        %v283 = vld [vmem:[%s191 + $0x198] sm:$0xff]
        %v284 = vld [vmem:[%s191 + $0x1a0] sm:$0xff]
        %v285 = vld [vmem:[%s191 + $0x1a8] sm:$0xff]
        %v286 = vld [vmem:[%s191 + $0x1b0] sm:$0xff]
        %v287 = vld [vmem:[%s191 + $0x1b8] sm:$0xff]
        %v288 = vld [vmem:[%s191 + $0x1c0] sm:$0xff]
        %v289 = vld [vmem:[%s191 + $0x1c8] sm:$0xff]
        %v290 = vld [vmem:[%s191 + $0x1d0] sm:$0xff]
        %v291 = vld [vmem:[%s191 + $0x1d8] sm:$0xff]
        %v292 = vld [vmem:[%s191 + $0x1e0] sm:$0xff]
        %v293 = vld [vmem:[%s191 + $0x1e8] sm:$0xff]
        %v294 = vld [vmem:[%s191 + $0x1f0] sm:$0xff]
        %v295 = vld [vmem:[%s191 + $0x1f8] sm:$0xff]
        %v296 = vld [vmem:[%s191 + $0x200] sm:$0xff]
        %v297 = vld [vmem:[%s191 + $0x208] sm:$0xff]
        %v298 = vld [vmem:[%s191 + $0x210] sm:$0xff]
        %v299 = vld [vmem:[%s191 + $0x218] sm:$0xff]
        %v300 = vld [vmem:[%s191 + $0x220] sm:$0xff]
        %v301 = vld [vmem:[%s191 + $0x228] sm:$0xff]
        %v302 = vld [vmem:[%s191 + $0x230] sm:$0xff]
        %v303 = vld [vmem:[%s191 + $0x238] sm:$0xff]
        %v304 = vld [vmem:[%s191 + $0x240] sm:$0xff]
        %v305 = vld [vmem:[%s191 + $0x248] sm:$0xff]
        %v306 = vld [vmem:[%s191 + $0x250] sm:$0xff]
        %v307 = vld [vmem:[%s191 + $0x258] sm:$0xff]
        %v308 = vld [vmem:[%s191 + $0x260] sm:$0xff]
        %v309 = vld [vmem:[%s191 + $0x268] sm:$0xff]
        %v310 = vld [vmem:[%s191 + $0x270] sm:$0xff]
        %v311 = vld [vmem:[%s191 + $0x278] sm:$0xff]
        %v312 = vld [vmem:[%s191 + $0x280] sm:$0xff]
        %v313 = vld [vmem:[%s191 + $0x288] sm:$0xff]
        %v314 = vld [vmem:[%s191 + $0x290] sm:$0xff]
        %v315 = vld [vmem:[%s191 + $0x298] sm:$0xff]
        %v316 = vld [vmem:[%s191 + $0x2a0] sm:$0xff]
        %v317 = vld [vmem:[%s191 + $0x2a8] sm:$0xff]
        %v318 = vld [vmem:[%s191 + $0x2b0] sm:$0xff]
        %v319 = vld [vmem:[%s191 + $0x2b8] sm:$0xff]
        %v320 = vld [vmem:[%s191 + $0x2c0] sm:$0xff]
        %v321 = vld [vmem:[%s191 + $0x2c8] sm:$0xff]
        %v322 = vld [vmem:[%s191 + $0x2d0] sm:$0xff]
        %v323 = vld [vmem:[%s191 + $0x2d8] sm:$0xff]
        %v324 = vld [vmem:[%s191 + $0x2e0] sm:$0xff]
        %v325 = vld [vmem:[%s191 + $0x2e8] sm:$0xff]
        %v326 = vld [vmem:[%s191 + $0x2f0] sm:$0xff]
        %v327 = vld [vmem:[%s191 + $0x2f8] sm:$0xff]
        %v328 = vld [vmem:[%s191 + $0x300] sm:$0xff]
        %v329 = vld [vmem:[%s191 + $0x308] sm:$0xff]
        %v330 = vld [vmem:[%s191 + $0x310] sm:$0xff]
        %v331 = vld [vmem:[%s191 + $0x318] sm:$0xff]
        %v332 = vld [vmem:[%s191 + $0x320] sm:$0xff]
        %v333 = vld [vmem:[%s191 + $0x328] sm:$0xff]
        %v334 = vld [vmem:[%s191 + $0x330] sm:$0xff]
        %v335 = vld [vmem:[%s191 + $0x338] sm:$0xff]
        %v336 = vld [vmem:[%s191 + $0x340] sm:$0xff]
        %v337 = vld [vmem:[%s191 + $0x348] sm:$0xff]
        %v338 = vld [vmem:[%s191 + $0x350] sm:$0xff]
        %v339 = vld [vmem:[%s191 + $0x358] sm:$0xff]
        %v340 = vld [vmem:[%s191 + $0x360] sm:$0xff]
        %v341 = vld [vmem:[%s191 + $0x368] sm:$0xff]
        %v342 = vld [vmem:[%s191 + $0x370] sm:$0xff]
        %v343 = vld [vmem:[%s191 + $0x378] sm:$0xff]
        %v344 = vld [vmem:[%s191 + $0x380] sm:$0xff]
        %v345 = vld [vmem:[%s191 + $0x388] sm:$0xff]
        %v346 = vld [vmem:[%s191 + $0x390] sm:$0xff]
        %v347 = vld [vmem:[%s191 + $0x398] sm:$0xff]
        %v348 = vld [vmem:[%s191 + $0x3a0] sm:$0xff]
        %v349 = vld [vmem:[%s191 + $0x3a8] sm:$0xff]
        %v350 = vld [vmem:[%s191 + $0x3b0] sm:$0xff]
        %v351 = vld [vmem:[%s191 + $0x3b8] sm:$0xff]
        %v352 = vld [vmem:[%s191 + $0x3c0] sm:$0xff]
        %v353 = vld [vmem:[%s191 + $0x3c8] sm:$0xff]
        %v354 = vld [vmem:[%s191 + $0x3d0] sm:$0xff]
        %v355 = vld [vmem:[%s191 + $0x3d8] sm:$0xff]
        %v356 = vld [vmem:[%s191 + $0x3e0] sm:$0xff]
        %v357 = vld [vmem:[%s191 + $0x3e8] sm:$0xff]
        %v358 = vld [vmem:[%s191 + $0x3f0] sm:$0xff]
        %v359 = vld [vmem:[%s191 + $0x3f8] sm:$0xff]
        %v360 = vld [vmem:[#allocation5] sm:$0xff]
        %v361 = vld [vmem:[#allocation5 + $0x8] sm:$0xff]
        %v362 = vld [vmem:[#allocation5 + $0x10] sm:$0xff]
        %v363 = vld [vmem:[#allocation5 + $0x18] sm:$0xff]
        %v364 = vld [vmem:[#allocation5 + $0x20] sm:$0xff]
        %v365 = vld [vmem:[#allocation5 + $0x28] sm:$0xff]
        %v366 = vld [vmem:[#allocation5 + $0x30] sm:$0xff]
        %v367 = vld [vmem:[#allocation5 + $0x38] sm:$0xff]
        %v368 = vld [vmem:[#allocation5 + $0x40] sm:$0xff]
        %v369 = vld [vmem:[#allocation5 + $0x48] sm:$0xff]
        %v370 = vld [vmem:[#allocation5 + $0x50] sm:$0xff]
        %v371 = vld [vmem:[#allocation5 + $0x58] sm:$0xff]
        %v372 = vld [vmem:[#allocation5 + $0x60] sm:$0xff]
        %v373 = vld [vmem:[#allocation5 + $0x68] sm:$0xff]
        %v374 = vld [vmem:[#allocation5 + $0x70] sm:$0xff]
        %v375 = vld [vmem:[#allocation5 + $0x78] sm:$0xff]
        %v376 = vld [vmem:[#allocation7] sm:$0x1]
        %v378 = vlaneseq
        %v379 = vshrl.u32 %v378, 7
        %v380 = vsub.s32 0, %v379
        %v381 = vrot.slane %v376, %v380
        %383 = vmatprep.subr.mxu0 0.0
        %384 = vmatpush1.msra.mxu0 %v360
        %385 = vmatprep.subr.mxu0 0.0
        %386 = vmatpush1.msra.mxu0 %v361
        %387 = vmatprep.subr.mxu0 0.0
        %388 = vmatpush1.msra.mxu0 %v362
        %389 = vmatprep.subr.mxu0 0.0
        %390 = vmatpush1.msra.mxu0 %v363
        %391 = vmatprep.subr.mxu0 0.0
        %392 = vmatpush1.msra.mxu0 %v364
        %393 = vmatprep.subr.mxu0 0.0
        %394 = vmatpush1.msra.mxu0 %v365
        %395 = vmatprep.subr.mxu0 0.0
        %396 = vmatpush1.msra.mxu0 %v366
        %397 = vmatprep.subr.mxu0 0.0
        %398 = vmatpush1.msra.mxu0 %v367
        %399 = vmatprep.subr.mxu0 0.0
        %400 = vmatpush1.msra.mxu0 %v368
        %401 = vmatprep.subr.mxu0 0.0
        %402 = vmatpush1.msra.mxu0 %v369
        %403 = vmatprep.subr.mxu0 0.0
        %404 = vmatpush1.msra.mxu0 %v370
        %405 = vmatprep.subr.mxu0 0.0
        %406 = vmatpush1.msra.mxu0 %v371
        %407 = vmatprep.subr.mxu0 0.0
        %408 = vmatpush1.msra.mxu0 %v372
        %409 = vmatprep.subr.mxu0 0.0
        %410 = vmatpush1.msra.mxu0 %v373
        %411 = vmatprep.subr.mxu0 0.0
        %412 = vmatpush1.msra.mxu0 %v374
        %413 = vmatprep.subr.mxu0 0.0
        %414 = vmatpush1.msra.mxu0 %v375
        %415 = vmatprep.subr.mxu0 0.0
        %416 = vmatpush1.msra.mxu0 0.0
        %417 = vmatprep.subr.mxu0 0.0
        %418 = vmatpush1.msra.mxu0 0.0
        %419 = vmatprep.subr.mxu0 0.0
        %420 = vmatpush1.msra.mxu0 0.0
        %421 = vmatprep.subr.mxu0 0.0
        %422 = vmatpush1.msra.mxu0 0.0
        %423 = vmatprep.subr.mxu0 0.0
        %424 = vmatpush1.msra.mxu0 0.0
        %425 = vmatprep.subr.mxu0 0.0
        %426 = vmatpush1.msra.mxu0 0.0
        %427 = vmatprep.subr.mxu0 0.0
        %428 = vmatpush1.msra.mxu0 0.0
        %429 = vmatprep.subr.mxu0 0.0
        %430 = vmatpush1.msra.mxu0 0.0
        %431 = vmatprep.subr.mxu0 0.0
        %432 = vmatpush1.msra.mxu0 0.0
        %433 = vmatprep.subr.mxu0 0.0
        %434 = vmatpush1.msra.mxu0 0.0
        %435 = vmatprep.subr.mxu0 0.0
        %436 = vmatpush1.msra.mxu0 0.0
        %437 = vmatprep.subr.mxu0 0.0
        %438 = vmatpush1.msra.mxu0 0.0
        %439 = vmatprep.subr.mxu0 0.0
        %440 = vmatpush1.msra.mxu0 0.0
        %441 = vmatprep.subr.mxu0 0.0
        %442 = vmatpush1.msra.mxu0 0.0
        %443 = vmatprep.subr.mxu0 0.0
        %444 = vmatpush1.msra.mxu0 0.0
        %445 = vmatprep.subr.mxu0 0.0
        %446 = vmatpush1.msra.mxu0 0.0
        %447 = vmatprep.mubr.f32.mxu0 0.0
        %448 = vmatmul.mubr.f32.gmra.mrb[0].mxu0 %v232
        %v449 = vpop.f32.mrb[0].mxu0
        %v450 = vadd.f32 %v381, %v449
        %v451 = vpop.f32.mrb[0].mxu0
        %452 = vmatprep.mubr.f32.mxu0 0.0
        %453 = vmatmul.mubr.f32.gmra.mrb[0].mxu0 %v233
        %v454 = vpop.f32.mrb[0].mxu0
        %v455 = vadd.f32 %v381, %v454
        %v456 = vpop.f32.mrb[0].mxu0
        %457 = vmatprep.mubr.f32.mxu0 0.0
        %458 = vmatmul.mubr.f32.gmra.mrb[0].mxu0 %v234
        %v459 = vpop.f32.mrb[0].mxu0
        %v460 = vadd.f32 %v381, %v459
        %v461 = vpop.f32.mrb[0].mxu0
        %462 = vmatprep.mubr.f32.mxu0 0.0
        %463 = vmatmul.mubr.f32.gmra.mrb[0].mxu0 %v235
        %v464 = vpop.f32.mrb[0].mxu0
        %v465 = vadd.f32 %v381, %v464
        %v466 = vpop.f32.mrb[0].mxu0
        %467 = vmatprep.mubr.f32.mxu0 0.0
        %468 = vmatmul.mubr.f32.gmra.mrb[0].mxu0 %v236
        %v469 = vpop.f32.mrb[0].mxu0
        %v470 = vadd.f32 %v381, %v469
        %v471 = vpop.f32.mrb[0].mxu0
        %472 = vmatprep.mubr.f32.mxu0 0.0
        %473 = vmatmul.mubr.f32.gmra.mrb[0].mxu0 %v237
        %v474 = vpop.f32.mrb[0].mxu0
        %v475 = vadd.f32 %v381, %v474
        %v476 = vpop.f32.mrb[0].mxu0
        %477 = vmatprep.mubr.f32.mxu0 0.0
        %478 = vmatmul.mubr.f32.gmra.mrb[0].mxu0 %v238
        %v479 = vpop.f32.mrb[0].mxu0
        %v480 = vadd.f32 %v381, %v479
        %v481 = vpop.f32.mrb[0].mxu0
        %482 = vmatprep.mubr.f32.mxu0 0.0
        %483 = vmatmul.mubr.f32.gmra.mrb[0].mxu0 %v239
        %v484 = vpop.f32.mrb[0].mxu0
        %v485 = vadd.f32 %v381, %v484
        %v486 = vpop.f32.mrb[0].mxu0
        %487 = vmatprep.mubr.f32.mxu0 0.0
        %488 = vmatmul.mubr.f32.gmra.mrb[0].mxu0 %v240
        %v489 = vpop.f32.mrb[0].mxu0
        %v490 = vadd.f32 %v381, %v489
        %v491 = vpop.f32.mrb[0].mxu0
        %492 = vmatprep.mubr.f32.mxu0 0.0
        %493 = vmatmul.mubr.f32.gmra.mrb[0].mxu0 %v241
        %v494 = vpop.f32.mrb[0].mxu0
        %v495 = vadd.f32 %v381, %v494
        %v496 = vpop.f32.mrb[0].mxu0
        %497 = vmatprep.mubr.f32.mxu0 0.0
        %498 = vmatmul.mubr.f32.gmra.mrb[0].mxu0 %v242
        %v499 = vpop.f32.mrb[0].mxu0
        %v500 = vadd.f32 %v381, %v499
        %v501 = vpop.f32.mrb[0].mxu0
        %502 = vmatprep.mubr.f32.mxu0 0.0
        %503 = vmatmul.mubr.f32.gmra.mrb[0].mxu0 %v243
        %v504 = vpop.f32.mrb[0].mxu0
        %v505 = vadd.f32 %v381, %v504
        %v506 = vpop.f32.mrb[0].mxu0
        %507 = vmatprep.mubr.f32.mxu0 0.0
        %508 = vmatmul.mubr.f32.gmra.mrb[0].mxu0 %v244
        %v509 = vpop.f32.mrb[0].mxu0
        %v510 = vadd.f32 %v381, %v509
        %v511 = vpop.f32.mrb[0].mxu0
        %512 = vmatprep.mubr.f32.mxu0 0.0
        %513 = vmatmul.mubr.f32.gmra.mrb[0].mxu0 %v245
        %v514 = vpop.f32.mrb[0].mxu0
        %v515 = vadd.f32 %v381, %v514
        %v516 = vpop.f32.mrb[0].mxu0
        %517 = vmatprep.mubr.f32.mxu0 0.0
        %518 = vmatmul.mubr.f32.gmra.mrb[0].mxu0 %v246
        %v519 = vpop.f32.mrb[0].mxu0
        %v520 = vadd.f32 %v381, %v519
        %v521 = vpop.f32.mrb[0].mxu0
        %522 = vmatprep.mubr.f32.mxu0 0.0
        %523 = vmatmul.mubr.f32.gmra.mrb[0].mxu0 %v247
        %v524 = vpop.f32.mrb[0].mxu0
        %v525 = vadd.f32 %v381, %v524
        %v526 = vpop.f32.mrb[0].mxu0
        %527 = vmatprep.mubr.f32.mxu0 0.0
        %528 = vmatmul.mubr.f32.gmra.mrb[0].mxu0 %v248
        %v529 = vpop.f32.mrb[0].mxu0
        %v530 = vadd.f32 %v381, %v529
        %v531 = vpop.f32.mrb[0].mxu0
        %532 = vmatprep.mubr.f32.mxu0 0.0
        %533 = vmatmul.mubr.f32.gmra.mrb[0].mxu0 %v249
        %v534 = vpop.f32.mrb[0].mxu0
        %v535 = vadd.f32 %v381, %v534
        %v536 = vpop.f32.mrb[0].mxu0
        %537 = vmatprep.mubr.f32.mxu0 0.0
        %538 = vmatmul.mubr.f32.gmra.mrb[0].mxu0 %v250
        %v539 = vpop.f32.mrb[0].mxu0
        %v540 = vadd.f32 %v381, %v539
        %v541 = vpop.f32.mrb[0].mxu0
        %542 = vmatprep.mubr.f32.mxu0 0.0
        %543 = vmatmul.mubr.f32.gmra.mrb[0].mxu0 %v251
        %v544 = vpop.f32.mrb[0].mxu0
        %v545 = vadd.f32 %v381, %v544
        %v546 = vpop.f32.mrb[0].mxu0
        %547 = vmatprep.mubr.f32.mxu0 0.0
        %548 = vmatmul.mubr.f32.gmra.mrb[0].mxu0 %v252
        %v549 = vpop.f32.mrb[0].mxu0
        %v550 = vadd.f32 %v381, %v549
        %v551 = vpop.f32.mrb[0].mxu0
        %552 = vmatprep.mubr.f32.mxu0 0.0
        %553 = vmatmul.mubr.f32.gmra.mrb[0].mxu0 %v253
        %v554 = vpop.f32.mrb[0].mxu0
        %v555 = vadd.f32 %v381, %v554
        %v556 = vpop.f32.mrb[0].mxu0
        %557 = vmatprep.mubr.f32.mxu0 0.0
        %558 = vmatmul.mubr.f32.gmra.mrb[0].mxu0 %v254
        %v559 = vpop.f32.mrb[0].mxu0
        %v560 = vadd.f32 %v381, %v559
        %v561 = vpop.f32.mrb[0].mxu0
        %562 = vmatprep.mubr.f32.mxu0 0.0
        %563 = vmatmul.mubr.f32.gmra.mrb[0].mxu0 %v255
        %v564 = vpop.f32.mrb[0].mxu0
        %v565 = vadd.f32 %v381, %v564
        %v566 = vpop.f32.mrb[0].mxu0
        %567 = vmatprep.mubr.f32.mxu0 0.0
        %568 = vmatmul.mubr.f32.gmra.mrb[0].mxu0 %v256
        %v569 = vpop.f32.mrb[0].mxu0
        %v570 = vadd.f32 %v381, %v569
        %v571 = vpop.f32.mrb[0].mxu0
        %572 = vmatprep.mubr.f32.mxu0 0.0
        %573 = vmatmul.mubr.f32.gmra.mrb[0].mxu0 %v257
        %v574 = vpop.f32.mrb[0].mxu0
        %v575 = vadd.f32 %v381, %v574
        %v576 = vpop.f32.mrb[0].mxu0
        %577 = vmatprep.mubr.f32.mxu0 0.0
        %578 = vmatmul.mubr.f32.gmra.mrb[0].mxu0 %v258
        %v579 = vpop.f32.mrb[0].mxu0
        %v580 = vadd.f32 %v381, %v579
        %v581 = vpop.f32.mrb[0].mxu0
        %582 = vmatprep.mubr.f32.mxu0 0.0
        %583 = vmatmul.mubr.f32.gmra.mrb[0].mxu0 %v259
        %v584 = vpop.f32.mrb[0].mxu0
        %v585 = vadd.f32 %v381, %v584
        %v586 = vpop.f32.mrb[0].mxu0
        %587 = vmatprep.mubr.f32.mxu0 0.0
        %588 = vmatmul.mubr.f32.gmra.mrb[0].mxu0 %v260
        %v589 = vpop.f32.mrb[0].mxu0
        %v590 = vadd.f32 %v381, %v589
        %v591 = vpop.f32.mrb[0].mxu0
        %592 = vmatprep.mubr.f32.mxu0 0.0
        %593 = vmatmul.mubr.f32.gmra.mrb[0].mxu0 %v261
        %v594 = vpop.f32.mrb[0].mxu0
        %v595 = vadd.f32 %v381, %v594
        %v596 = vpop.f32.mrb[0].mxu0
        %597 = vmatprep.mubr.f32.mxu0 0.0
        %598 = vmatmul.mubr.f32.gmra.mrb[0].mxu0 %v262
        %v599 = vpop.f32.mrb[0].mxu0
        %v600 = vadd.f32 %v381, %v599
        %v601 = vpop.f32.mrb[0].mxu0
        %602 = vmatprep.mubr.f32.mxu0 0.0
        %603 = vmatmul.mubr.f32.gmra.mrb[0].mxu0 %v263
        %v604 = vpop.f32.mrb[0].mxu0
        %v605 = vadd.f32 %v381, %v604
        %v606 = vpop.f32.mrb[0].mxu0
        %607 = vmatprep.mubr.f32.mxu0 0.0
        %608 = vmatmul.mubr.f32.gmra.mrb[0].mxu0 %v264
        %v609 = vpop.f32.mrb[0].mxu0
        %v610 = vadd.f32 %v381, %v609
        %v611 = vpop.f32.mrb[0].mxu0
        %612 = vmatprep.mubr.f32.mxu0 0.0
        %613 = vmatmul.mubr.f32.gmra.mrb[0].mxu0 %v265
        %v614 = vpop.f32.mrb[0].mxu0
        %v615 = vadd.f32 %v381, %v614
        %v616 = vpop.f32.mrb[0].mxu0
        %617 = vmatprep.mubr.f32.mxu0 0.0
        %618 = vmatmul.mubr.f32.gmra.mrb[0].mxu0 %v266
        %v619 = vpop.f32.mrb[0].mxu0
        %v620 = vadd.f32 %v381, %v619
        %v621 = vpop.f32.mrb[0].mxu0
        %622 = vmatprep.mubr.f32.mxu0 0.0
        %623 = vmatmul.mubr.f32.gmra.mrb[0].mxu0 %v267
        %v624 = vpop.f32.mrb[0].mxu0
        %v625 = vadd.f32 %v381, %v624
        %v626 = vpop.f32.mrb[0].mxu0
        %627 = vmatprep.mubr.f32.mxu0 0.0
        %628 = vmatmul.mubr.f32.gmra.mrb[0].mxu0 %v268
        %v629 = vpop.f32.mrb[0].mxu0
        %v630 = vadd.f32 %v381, %v629
        %v631 = vpop.f32.mrb[0].mxu0
        %632 = vmatprep.mubr.f32.mxu0 0.0
        %633 = vmatmul.mubr.f32.gmra.mrb[0].mxu0 %v269
        %v634 = vpop.f32.mrb[0].mxu0
        %v635 = vadd.f32 %v381, %v634
        %v636 = vpop.f32.mrb[0].mxu0
        %637 = vmatprep.mubr.f32.mxu0 0.0
        %638 = vmatmul.mubr.f32.gmra.mrb[0].mxu0 %v270
        %v639 = vpop.f32.mrb[0].mxu0
        %v640 = vadd.f32 %v381, %v639
        %v641 = vpop.f32.mrb[0].mxu0
        %642 = vmatprep.mubr.f32.mxu0 0.0
        %643 = vmatmul.mubr.f32.gmra.mrb[0].mxu0 %v271
        %v644 = vpop.f32.mrb[0].mxu0
        %v645 = vadd.f32 %v381, %v644
        %v646 = vpop.f32.mrb[0].mxu0
        %647 = vmatprep.mubr.f32.mxu0 0.0
        %648 = vmatmul.mubr.f32.gmra.mrb[0].mxu0 %v272
        %v649 = vpop.f32.mrb[0].mxu0
        %v650 = vadd.f32 %v381, %v649
        %v651 = vpop.f32.mrb[0].mxu0
        %652 = vmatprep.mubr.f32.mxu0 0.0
        %653 = vmatmul.mubr.f32.gmra.mrb[0].mxu0 %v273
        %v654 = vpop.f32.mrb[0].mxu0
        %v655 = vadd.f32 %v381, %v654
        %v656 = vpop.f32.mrb[0].mxu0
        %657 = vmatprep.mubr.f32.mxu0 0.0
        %658 = vmatmul.mubr.f32.gmra.mrb[0].mxu0 %v274
        %v659 = vpop.f32.mrb[0].mxu0
        %v660 = vadd.f32 %v381, %v659
        %v661 = vpop.f32.mrb[0].mxu0
        %662 = vmatprep.mubr.f32.mxu0 0.0
        %663 = vmatmul.mubr.f32.gmra.mrb[0].mxu0 %v275
        %v664 = vpop.f32.mrb[0].mxu0
        %v665 = vadd.f32 %v381, %v664
        %v666 = vpop.f32.mrb[0].mxu0
        %667 = vmatprep.mubr.f32.mxu0 0.0
        %668 = vmatmul.mubr.f32.gmra.mrb[0].mxu0 %v276
        %v669 = vpop.f32.mrb[0].mxu0
        %v670 = vadd.f32 %v381, %v669
        %v671 = vpop.f32.mrb[0].mxu0
        %672 = vmatprep.mubr.f32.mxu0 0.0
        %673 = vmatmul.mubr.f32.gmra.mrb[0].mxu0 %v277
        %v674 = vpop.f32.mrb[0].mxu0
        %v675 = vadd.f32 %v381, %v674
        %v676 = vpop.f32.mrb[0].mxu0
        %677 = vmatprep.mubr.f32.mxu0 0.0
        %678 = vmatmul.mubr.f32.gmra.mrb[0].mxu0 %v278
        %v679 = vpop.f32.mrb[0].mxu0
        %v680 = vadd.f32 %v381, %v679
        %v681 = vpop.f32.mrb[0].mxu0
        %682 = vmatprep.mubr.f32.mxu0 0.0
        %683 = vmatmul.mubr.f32.gmra.mrb[0].mxu0 %v279
        %v684 = vpop.f32.mrb[0].mxu0
        %v685 = vadd.f32 %v381, %v684
        %v686 = vpop.f32.mrb[0].mxu0
        %687 = vmatprep.mubr.f32.mxu0 0.0
        %688 = vmatmul.mubr.f32.gmra.mrb[0].mxu0 %v280
        %v689 = vpop.f32.mrb[0].mxu0
        %v690 = vadd.f32 %v381, %v689
        %v691 = vpop.f32.mrb[0].mxu0
        %692 = vmatprep.mubr.f32.mxu0 0.0
        %693 = vmatmul.mubr.f32.gmra.mrb[0].mxu0 %v281
        %v694 = vpop.f32.mrb[0].mxu0
        %v695 = vadd.f32 %v381, %v694
        %v696 = vpop.f32.mrb[0].mxu0
        %697 = vmatprep.mubr.f32.mxu0 0.0
        %698 = vmatmul.mubr.f32.gmra.mrb[0].mxu0 %v282
        %v699 = vpop.f32.mrb[0].mxu0
        %v700 = vadd.f32 %v381, %v699
        %v701 = vpop.f32.mrb[0].mxu0
        %702 = vmatprep.mubr.f32.mxu0 0.0
        %703 = vmatmul.mubr.f32.gmra.mrb[0].mxu0 %v283
        %v704 = vpop.f32.mrb[0].mxu0
        %v705 = vadd.f32 %v381, %v704
        %v706 = vpop.f32.mrb[0].mxu0
        %707 = vmatprep.mubr.f32.mxu0 0.0
        %708 = vmatmul.mubr.f32.gmra.mrb[0].mxu0 %v284
        %v709 = vpop.f32.mrb[0].mxu0
        %v710 = vadd.f32 %v381, %v709
        %v711 = vpop.f32.mrb[0].mxu0
        %712 = vmatprep.mubr.f32.mxu0 0.0
        %713 = vmatmul.mubr.f32.gmra.mrb[0].mxu0 %v285
        %v714 = vpop.f32.mrb[0].mxu0
        %v715 = vadd.f32 %v381, %v714
        %v716 = vpop.f32.mrb[0].mxu0
        %717 = vmatprep.mubr.f32.mxu0 0.0
        %718 = vmatmul.mubr.f32.gmra.mrb[0].mxu0 %v286
        %v719 = vpop.f32.mrb[0].mxu0
        %v720 = vadd.f32 %v381, %v719
        %v721 = vpop.f32.mrb[0].mxu0
        %722 = vmatprep.mubr.f32.mxu0 0.0
        %723 = vmatmul.mubr.f32.gmra.mrb[0].mxu0 %v287
        %v724 = vpop.f32.mrb[0].mxu0
        %v725 = vadd.f32 %v381, %v724
        %v726 = vpop.f32.mrb[0].mxu0
        %727 = vmatprep.mubr.f32.mxu0 0.0
        %728 = vmatmul.mubr.f32.gmra.mrb[0].mxu0 %v288
        %v729 = vpop.f32.mrb[0].mxu0
        %v730 = vadd.f32 %v381, %v729
        %v731 = vpop.f32.mrb[0].mxu0
        %732 = vmatprep.mubr.f32.mxu0 0.0
        %733 = vmatmul.mubr.f32.gmra.mrb[0].mxu0 %v289
        %v734 = vpop.f32.mrb[0].mxu0
        %v735 = vadd.f32 %v381, %v734
        %v736 = vpop.f32.mrb[0].mxu0
        %737 = vmatprep.mubr.f32.mxu0 0.0
        %738 = vmatmul.mubr.f32.gmra.mrb[0].mxu0 %v290
        %v739 = vpop.f32.mrb[0].mxu0
        %v740 = vadd.f32 %v381, %v739
        %v741 = vpop.f32.mrb[0].mxu0
        %742 = vmatprep.mubr.f32.mxu0 0.0
        %743 = vmatmul.mubr.f32.gmra.mrb[0].mxu0 %v291
        %v744 = vpop.f32.mrb[0].mxu0
        %v745 = vadd.f32 %v381, %v744
        %v746 = vpop.f32.mrb[0].mxu0
        %747 = vmatprep.mubr.f32.mxu0 0.0
        %748 = vmatmul.mubr.f32.gmra.mrb[0].mxu0 %v292
        %v749 = vpop.f32.mrb[0].mxu0
        %v750 = vadd.f32 %v381, %v749
        %v751 = vpop.f32.mrb[0].mxu0
        %752 = vmatprep.mubr.f32.mxu0 0.0
        %753 = vmatmul.mubr.f32.gmra.mrb[0].mxu0 %v293
        %v754 = vpop.f32.mrb[0].mxu0
        %v755 = vadd.f32 %v381, %v754
        %v756 = vpop.f32.mrb[0].mxu0
        %757 = vmatprep.mubr.f32.mxu0 0.0
        %758 = vmatmul.mubr.f32.gmra.mrb[0].mxu0 %v294
        %v759 = vpop.f32.mrb[0].mxu0
        %v760 = vadd.f32 %v381, %v759
        %v761 = vpop.f32.mrb[0].mxu0
        %762 = vmatprep.mubr.f32.mxu0 0.0
        %763 = vmatmul.mubr.f32.gmra.mrb[0].mxu0 %v295
        %v764 = vpop.f32.mrb[0].mxu0
        %v765 = vadd.f32 %v381, %v764
        %v766 = vpop.f32.mrb[0].mxu0
        %767 = vmatprep.mubr.f32.mxu0 0.0
        %768 = vmatmul.mubr.f32.gmra.mrb[0].mxu0 %v296
        %v769 = vpop.f32.mrb[0].mxu0
        %v770 = vadd.f32 %v381, %v769
        %v771 = vpop.f32.mrb[0].mxu0
        %772 = vmatprep.mubr.f32.mxu0 0.0
        %773 = vmatmul.mubr.f32.gmra.mrb[0].mxu0 %v297
        %v774 = vpop.f32.mrb[0].mxu0
        %v775 = vadd.f32 %v381, %v774
        %v776 = vpop.f32.mrb[0].mxu0
        %777 = vmatprep.mubr.f32.mxu0 0.0
        %778 = vmatmul.mubr.f32.gmra.mrb[0].mxu0 %v298
        %v779 = vpop.f32.mrb[0].mxu0
        %v780 = vadd.f32 %v381, %v779
        %v781 = vpop.f32.mrb[0].mxu0
        %782 = vmatprep.mubr.f32.mxu0 0.0
        %783 = vmatmul.mubr.f32.gmra.mrb[0].mxu0 %v299
        %v784 = vpop.f32.mrb[0].mxu0
        %v785 = vadd.f32 %v381, %v784
        %v786 = vpop.f32.mrb[0].mxu0
        %787 = vmatprep.mubr.f32.mxu0 0.0
        %788 = vmatmul.mubr.f32.gmra.mrb[0].mxu0 %v300
        %v789 = vpop.f32.mrb[0].mxu0
        %v790 = vadd.f32 %v381, %v789
        %v791 = vpop.f32.mrb[0].mxu0
        %792 = vmatprep.mubr.f32.mxu0 0.0
        %793 = vmatmul.mubr.f32.gmra.mrb[0].mxu0 %v301
        %v794 = vpop.f32.mrb[0].mxu0
        %v795 = vadd.f32 %v381, %v794
        %v796 = vpop.f32.mrb[0].mxu0
        %797 = vmatprep.mubr.f32.mxu0 0.0
        %798 = vmatmul.mubr.f32.gmra.mrb[0].mxu0 %v302
        %v799 = vpop.f32.mrb[0].mxu0
        %v800 = vadd.f32 %v381, %v799
        %v801 = vpop.f32.mrb[0].mxu0
        %802 = vmatprep.mubr.f32.mxu0 0.0
        %803 = vmatmul.mubr.f32.gmra.mrb[0].mxu0 %v303
        %v804 = vpop.f32.mrb[0].mxu0
        %v805 = vadd.f32 %v381, %v804
        %v806 = vpop.f32.mrb[0].mxu0
        %807 = vmatprep.mubr.f32.mxu0 0.0
        %808 = vmatmul.mubr.f32.gmra.mrb[0].mxu0 %v304
        %v809 = vpop.f32.mrb[0].mxu0
        %v810 = vadd.f32 %v381, %v809
        %v811 = vpop.f32.mrb[0].mxu0
        %812 = vmatprep.mubr.f32.mxu0 0.0
        %813 = vmatmul.mubr.f32.gmra.mrb[0].mxu0 %v305
        %v814 = vpop.f32.mrb[0].mxu0
        %v815 = vadd.f32 %v381, %v814
        %v816 = vpop.f32.mrb[0].mxu0
        %817 = vmatprep.mubr.f32.mxu0 0.0
        %818 = vmatmul.mubr.f32.gmra.mrb[0].mxu0 %v306
        %v819 = vpop.f32.mrb[0].mxu0
        %v820 = vadd.f32 %v381, %v819
        %v821 = vpop.f32.mrb[0].mxu0
        %822 = vmatprep.mubr.f32.mxu0 0.0
        %823 = vmatmul.mubr.f32.gmra.mrb[0].mxu0 %v307
        %v824 = vpop.f32.mrb[0].mxu0
        %v825 = vadd.f32 %v381, %v824
        %v826 = vpop.f32.mrb[0].mxu0
        %827 = vmatprep.mubr.f32.mxu0 0.0
        %828 = vmatmul.mubr.f32.gmra.mrb[0].mxu0 %v308
        %v829 = vpop.f32.mrb[0].mxu0
        %v830 = vadd.f32 %v381, %v829
        %v831 = vpop.f32.mrb[0].mxu0
        %832 = vmatprep.mubr.f32.mxu0 0.0
        %833 = vmatmul.mubr.f32.gmra.mrb[0].mxu0 %v309
        %v834 = vpop.f32.mrb[0].mxu0
        %v835 = vadd.f32 %v381, %v834
        %v836 = vpop.f32.mrb[0].mxu0
        %837 = vmatprep.mubr.f32.mxu0 0.0
        %838 = vmatmul.mubr.f32.gmra.mrb[0].mxu0 %v310
        %v839 = vpop.f32.mrb[0].mxu0
        %v840 = vadd.f32 %v381, %v839
        %v841 = vpop.f32.mrb[0].mxu0
        %842 = vmatprep.mubr.f32.mxu0 0.0
        %843 = vmatmul.mubr.f32.gmra.mrb[0].mxu0 %v311
        %v844 = vpop.f32.mrb[0].mxu0
        %v845 = vadd.f32 %v381, %v844
        %v846 = vpop.f32.mrb[0].mxu0
        %847 = vmatprep.mubr.f32.mxu0 0.0
        %848 = vmatmul.mubr.f32.gmra.mrb[0].mxu0 %v312
        %v849 = vpop.f32.mrb[0].mxu0
        %v850 = vadd.f32 %v381, %v849
        %v851 = vpop.f32.mrb[0].mxu0
        %852 = vmatprep.mubr.f32.mxu0 0.0
        %853 = vmatmul.mubr.f32.gmra.mrb[0].mxu0 %v313
        %v854 = vpop.f32.mrb[0].mxu0
        %v855 = vadd.f32 %v381, %v854
        %v856 = vpop.f32.mrb[0].mxu0
        %857 = vmatprep.mubr.f32.mxu0 0.0
        %858 = vmatmul.mubr.f32.gmra.mrb[0].mxu0 %v314
        %v859 = vpop.f32.mrb[0].mxu0
        %v860 = vadd.f32 %v381, %v859
        %v861 = vpop.f32.mrb[0].mxu0
        %862 = vmatprep.mubr.f32.mxu0 0.0
        %863 = vmatmul.mubr.f32.gmra.mrb[0].mxu0 %v315
        %v864 = vpop.f32.mrb[0].mxu0
        %v865 = vadd.f32 %v381, %v864
        %v866 = vpop.f32.mrb[0].mxu0
        %867 = vmatprep.mubr.f32.mxu0 0.0
        %868 = vmatmul.mubr.f32.gmra.mrb[0].mxu0 %v316
        %v869 = vpop.f32.mrb[0].mxu0
        %v870 = vadd.f32 %v381, %v869
        %v871 = vpop.f32.mrb[0].mxu0
        %872 = vmatprep.mubr.f32.mxu0 0.0
        %873 = vmatmul.mubr.f32.gmra.mrb[0].mxu0 %v317
        %v874 = vpop.f32.mrb[0].mxu0
        %v875 = vadd.f32 %v381, %v874
        %v876 = vpop.f32.mrb[0].mxu0
        %877 = vmatprep.mubr.f32.mxu0 0.0
        %878 = vmatmul.mubr.f32.gmra.mrb[0].mxu0 %v318
        %v879 = vpop.f32.mrb[0].mxu0
        %v880 = vadd.f32 %v381, %v879
        %v881 = vpop.f32.mrb[0].mxu0
        %882 = vmatprep.mubr.f32.mxu0 0.0
        %883 = vmatmul.mubr.f32.gmra.mrb[0].mxu0 %v319
        %v884 = vpop.f32.mrb[0].mxu0
        %v885 = vadd.f32 %v381, %v884
        %v886 = vpop.f32.mrb[0].mxu0
        %887 = vmatprep.mubr.f32.mxu0 0.0
        %888 = vmatmul.mubr.f32.gmra.mrb[0].mxu0 %v320
        %v889 = vpop.f32.mrb[0].mxu0
        %v890 = vadd.f32 %v381, %v889
        %v891 = vpop.f32.mrb[0].mxu0
        %892 = vmatprep.mubr.f32.mxu0 0.0
        %893 = vmatmul.mubr.f32.gmra.mrb[0].mxu0 %v321
        %v894 = vpop.f32.mrb[0].mxu0
        %v895 = vadd.f32 %v381, %v894
        %v896 = vpop.f32.mrb[0].mxu0
        %897 = vmatprep.mubr.f32.mxu0 0.0
        %898 = vmatmul.mubr.f32.gmra.mrb[0].mxu0 %v322
        %v899 = vpop.f32.mrb[0].mxu0
        %v900 = vadd.f32 %v381, %v899
        %v901 = vpop.f32.mrb[0].mxu0
        %902 = vmatprep.mubr.f32.mxu0 0.0
        %903 = vmatmul.mubr.f32.gmra.mrb[0].mxu0 %v323
        %v904 = vpop.f32.mrb[0].mxu0
        %v905 = vadd.f32 %v381, %v904
        %v906 = vpop.f32.mrb[0].mxu0
        %907 = vmatprep.mubr.f32.mxu0 0.0
        %908 = vmatmul.mubr.f32.gmra.mrb[0].mxu0 %v324
        %v909 = vpop.f32.mrb[0].mxu0
        %v910 = vadd.f32 %v381, %v909
        %v911 = vpop.f32.mrb[0].mxu0
        %912 = vmatprep.mubr.f32.mxu0 0.0
        %913 = vmatmul.mubr.f32.gmra.mrb[0].mxu0 %v325
        %v914 = vpop.f32.mrb[0].mxu0
        %v915 = vadd.f32 %v381, %v914
        %v916 = vpop.f32.mrb[0].mxu0
        %917 = vmatprep.mubr.f32.mxu0 0.0
        %918 = vmatmul.mubr.f32.gmra.mrb[0].mxu0 %v326
        %v919 = vpop.f32.mrb[0].mxu0
        %v920 = vadd.f32 %v381, %v919
        %v921 = vpop.f32.mrb[0].mxu0
        %922 = vmatprep.mubr.f32.mxu0 0.0
        %923 = vmatmul.mubr.f32.gmra.mrb[0].mxu0 %v327
        %v924 = vpop.f32.mrb[0].mxu0
        %v925 = vadd.f32 %v381, %v924
        %v926 = vpop.f32.mrb[0].mxu0
        %927 = vmatprep.mubr.f32.mxu0 0.0
        %928 = vmatmul.mubr.f32.gmra.mrb[0].mxu0 %v328
        %v929 = vpop.f32.mrb[0].mxu0
        %v930 = vadd.f32 %v381, %v929
        %v931 = vpop.f32.mrb[0].mxu0
        %932 = vmatprep.mubr.f32.mxu0 0.0
        %933 = vmatmul.mubr.f32.gmra.mrb[0].mxu0 %v329
        %v934 = vpop.f32.mrb[0].mxu0
        %v935 = vadd.f32 %v381, %v934
        %v936 = vpop.f32.mrb[0].mxu0
        %937 = vmatprep.mubr.f32.mxu0 0.0
        %938 = vmatmul.mubr.f32.gmra.mrb[0].mxu0 %v330
        %v939 = vpop.f32.mrb[0].mxu0
        %v940 = vadd.f32 %v381, %v939
        %v941 = vpop.f32.mrb[0].mxu0
        %942 = vmatprep.mubr.f32.mxu0 0.0
        %943 = vmatmul.mubr.f32.gmra.mrb[0].mxu0 %v331
        %v944 = vpop.f32.mrb[0].mxu0
        %v945 = vadd.f32 %v381, %v944
        %v946 = vpop.f32.mrb[0].mxu0
        %947 = vmatprep.mubr.f32.mxu0 0.0
        %948 = vmatmul.mubr.f32.gmra.mrb[0].mxu0 %v332
        %v949 = vpop.f32.mrb[0].mxu0
        %v950 = vadd.f32 %v381, %v949
        %v951 = vpop.f32.mrb[0].mxu0
        %952 = vmatprep.mubr.f32.mxu0 0.0
        %953 = vmatmul.mubr.f32.gmra.mrb[0].mxu0 %v333
        %v954 = vpop.f32.mrb[0].mxu0
        %v955 = vadd.f32 %v381, %v954
        %v956 = vpop.f32.mrb[0].mxu0
        %957 = vmatprep.mubr.f32.mxu0 0.0
        %958 = vmatmul.mubr.f32.gmra.mrb[0].mxu0 %v334
        %v959 = vpop.f32.mrb[0].mxu0
        %v960 = vadd.f32 %v381, %v959
        %v961 = vpop.f32.mrb[0].mxu0
        %962 = vmatprep.mubr.f32.mxu0 0.0
        %963 = vmatmul.mubr.f32.gmra.mrb[0].mxu0 %v335
        %v964 = vpop.f32.mrb[0].mxu0
        %v965 = vadd.f32 %v381, %v964
        %v966 = vpop.f32.mrb[0].mxu0
        %967 = vmatprep.mubr.f32.mxu0 0.0
        %968 = vmatmul.mubr.f32.gmra.mrb[0].mxu0 %v336
        %v969 = vpop.f32.mrb[0].mxu0
        %v970 = vadd.f32 %v381, %v969
        %v971 = vpop.f32.mrb[0].mxu0
        %972 = vmatprep.mubr.f32.mxu0 0.0
        %973 = vmatmul.mubr.f32.gmra.mrb[0].mxu0 %v337
        %v974 = vpop.f32.mrb[0].mxu0
        %v975 = vadd.f32 %v381, %v974
        %v976 = vpop.f32.mrb[0].mxu0
        %977 = vmatprep.mubr.f32.mxu0 0.0
        %978 = vmatmul.mubr.f32.gmra.mrb[0].mxu0 %v338
        %v979 = vpop.f32.mrb[0].mxu0
        %v980 = vadd.f32 %v381, %v979
        %v981 = vpop.f32.mrb[0].mxu0
        %982 = vmatprep.mubr.f32.mxu0 0.0
        %983 = vmatmul.mubr.f32.gmra.mrb[0].mxu0 %v339
        %v984 = vpop.f32.mrb[0].mxu0
        %v985 = vadd.f32 %v381, %v984
        %v986 = vpop.f32.mrb[0].mxu0
        %987 = vmatprep.mubr.f32.mxu0 0.0
        %988 = vmatmul.mubr.f32.gmra.mrb[0].mxu0 %v340
        %v989 = vpop.f32.mrb[0].mxu0
        %v990 = vadd.f32 %v381, %v989
        %v991 = vpop.f32.mrb[0].mxu0
        %992 = vmatprep.mubr.f32.mxu0 0.0
        %993 = vmatmul.mubr.f32.gmra.mrb[0].mxu0 %v341
        %v994 = vpop.f32.mrb[0].mxu0
        %v995 = vadd.f32 %v381, %v994
        %v996 = vpop.f32.mrb[0].mxu0
        %997 = vmatprep.mubr.f32.mxu0 0.0
        %998 = vmatmul.mubr.f32.gmra.mrb[0].mxu0 %v342
        %v999 = vpop.f32.mrb[0].mxu0
        %v1000 = vadd.f32 %v381, %v999
        %v1001 = vpop.f32.mrb[0].mxu0
        %1002 = vmatprep.mubr.f32.mxu0 0.0
        %1003 = vmatmul.mubr.f32.gmra.mrb[0].mxu0 %v343
        %v1004 = vpop.f32.mrb[0].mxu0
        %v1005 = vadd.f32 %v381, %v1004
        %v1006 = vpop.f32.mrb[0].mxu0
        %1007 = vmatprep.mubr.f32.mxu0 0.0
        %1008 = vmatmul.mubr.f32.gmra.mrb[0].mxu0 %v344
        %v1009 = vpop.f32.mrb[0].mxu0
        %v1010 = vadd.f32 %v381, %v1009
        %v1011 = vpop.f32.mrb[0].mxu0
        %1012 = vmatprep.mubr.f32.mxu0 0.0
        %1013 = vmatmul.mubr.f32.gmra.mrb[0].mxu0 %v345
        %v1014 = vpop.f32.mrb[0].mxu0
        %v1015 = vadd.f32 %v381, %v1014
        %v1016 = vpop.f32.mrb[0].mxu0
        %1017 = vmatprep.mubr.f32.mxu0 0.0
        %1018 = vmatmul.mubr.f32.gmra.mrb[0].mxu0 %v346
        %v1019 = vpop.f32.mrb[0].mxu0
        %v1020 = vadd.f32 %v381, %v1019
        %v1021 = vpop.f32.mrb[0].mxu0
        %1022 = vmatprep.mubr.f32.mxu0 0.0
        %1023 = vmatmul.mubr.f32.gmra.mrb[0].mxu0 %v347
        %v1024 = vpop.f32.mrb[0].mxu0
        %v1025 = vadd.f32 %v381, %v1024
        %v1026 = vpop.f32.mrb[0].mxu0
        %1027 = vmatprep.mubr.f32.mxu0 0.0
        %1028 = vmatmul.mubr.f32.gmra.mrb[0].mxu0 %v348
        %v1029 = vpop.f32.mrb[0].mxu0
        %v1030 = vadd.f32 %v381, %v1029
        %v1031 = vpop.f32.mrb[0].mxu0
        %1032 = vmatprep.mubr.f32.mxu0 0.0
        %1033 = vmatmul.mubr.f32.gmra.mrb[0].mxu0 %v349
        %v1034 = vpop.f32.mrb[0].mxu0
        %v1035 = vadd.f32 %v381, %v1034
        %v1036 = vpop.f32.mrb[0].mxu0
        %1037 = vmatprep.mubr.f32.mxu0 0.0
        %1038 = vmatmul.mubr.f32.gmra.mrb[0].mxu0 %v350
        %v1039 = vpop.f32.mrb[0].mxu0
        %v1040 = vadd.f32 %v381, %v1039
        %v1041 = vpop.f32.mrb[0].mxu0
        %1042 = vmatprep.mubr.f32.mxu0 0.0
        %1043 = vmatmul.mubr.f32.gmra.mrb[0].mxu0 %v351
        %v1044 = vpop.f32.mrb[0].mxu0
        %v1045 = vadd.f32 %v381, %v1044
        %v1046 = vpop.f32.mrb[0].mxu0
        %1047 = vmatprep.mubr.f32.mxu0 0.0
        %1048 = vmatmul.mubr.f32.gmra.mrb[0].mxu0 %v352
        %v1049 = vpop.f32.mrb[0].mxu0
        %v1050 = vadd.f32 %v381, %v1049
        %v1051 = vpop.f32.mrb[0].mxu0
        %1052 = vmatprep.mubr.f32.mxu0 0.0
        %1053 = vmatmul.mubr.f32.gmra.mrb[0].mxu0 %v353
        %v1054 = vpop.f32.mrb[0].mxu0
        %v1055 = vadd.f32 %v381, %v1054
        %v1056 = vpop.f32.mrb[0].mxu0
        %1057 = vmatprep.mubr.f32.mxu0 0.0
        %1058 = vmatmul.mubr.f32.gmra.mrb[0].mxu0 %v354
        %v1059 = vpop.f32.mrb[0].mxu0
        %v1060 = vadd.f32 %v381, %v1059
        %v1061 = vpop.f32.mrb[0].mxu0
        %1062 = vmatprep.mubr.f32.mxu0 0.0
        %1063 = vmatmul.mubr.f32.gmra.mrb[0].mxu0 %v355
        %v1064 = vpop.f32.mrb[0].mxu0
        %v1065 = vadd.f32 %v381, %v1064
        %v1066 = vpop.f32.mrb[0].mxu0
        %1067 = vmatprep.mubr.f32.mxu0 0.0
        %1068 = vmatmul.mubr.f32.gmra.mrb[0].mxu0 %v356
        %v1069 = vpop.f32.mrb[0].mxu0
        %v1070 = vadd.f32 %v381, %v1069
        %v1071 = vpop.f32.mrb[0].mxu0
        %1072 = vmatprep.mubr.f32.mxu0 0.0
        %1073 = vmatmul.mubr.f32.gmra.mrb[0].mxu0 %v357
        %v1074 = vpop.f32.mrb[0].mxu0
        %v1075 = vadd.f32 %v381, %v1074
        %v1076 = vpop.f32.mrb[0].mxu0
        %1077 = vmatprep.mubr.f32.mxu0 0.0
        %1078 = vmatmul.mubr.f32.gmra.mrb[0].mxu0 %v358
        %v1079 = vpop.f32.mrb[0].mxu0
        %v1080 = vadd.f32 %v381, %v1079
        %v1081 = vpop.f32.mrb[0].mxu0
        %1082 = vmatprep.mubr.f32.mxu0 0.0
        %1083 = vmatmul.mubr.f32.gmra.mrb[0].mxu0 %v359
        %v1084 = vpop.f32.mrb[0].mxu0
        %v1085 = vadd.f32 %v381, %v1084
        %v1086 = vpop.f32.mrb[0].mxu0
        %1087 = vdwg.mxu0
        %1088 = vst [vmem:[%s221] sm:$0xff] %v450
        %1089 = vst [vmem:[%s221 + $0x8] sm:$0xff] %v455
        %1090 = vst [vmem:[%s221 + $0x10] sm:$0xff] %v460
        %1091 = vst [vmem:[%s221 + $0x18] sm:$0xff] %v465
        %1092 = vst [vmem:[%s221 + $0x20] sm:$0xff] %v470
        %1093 = vst [vmem:[%s221 + $0x28] sm:$0xff] %v475
        %1094 = vst [vmem:[%s221 + $0x30] sm:$0xff] %v480
        %1095 = vst [vmem:[%s221 + $0x38] sm:$0xff] %v485
        %1096 = vst [vmem:[%s221 + $0x40] sm:$0xff] %v490
        %1097 = vst [vmem:[%s221 + $0x48] sm:$0xff] %v495
        %1098 = vst [vmem:[%s221 + $0x50] sm:$0xff] %v500
        %1099 = vst [vmem:[%s221 + $0x58] sm:$0xff] %v505
        %1100 = vst [vmem:[%s221 + $0x60] sm:$0xff] %v510
        %1101 = vst [vmem:[%s221 + $0x68] sm:$0xff] %v515
        %1102 = vst [vmem:[%s221 + $0x70] sm:$0xff] %v520
        %1103 = vst [vmem:[%s221 + $0x78] sm:$0xff] %v525
        %1104 = vst [vmem:[%s221 + $0x80] sm:$0xff] %v530
        %1105 = vst [vmem:[%s221 + $0x88] sm:$0xff] %v535
        %1106 = vst [vmem:[%s221 + $0x90] sm:$0xff] %v540
        %1107 = vst [vmem:[%s221 + $0x98] sm:$0xff] %v545
        %1108 = vst [vmem:[%s221 + $0xa0] sm:$0xff] %v550
        %1109 = vst [vmem:[%s221 + $0xa8] sm:$0xff] %v555
        %1110 = vst [vmem:[%s221 + $0xb0] sm:$0xff] %v560
        %1111 = vst [vmem:[%s221 + $0xb8] sm:$0xff] %v565
        %1112 = vst [vmem:[%s221 + $0xc0] sm:$0xff] %v570
        %1113 = vst [vmem:[%s221 + $0xc8] sm:$0xff] %v575
        %1114 = vst [vmem:[%s221 + $0xd0] sm:$0xff] %v580
        %1115 = vst [vmem:[%s221 + $0xd8] sm:$0xff] %v585
        %1116 = vst [vmem:[%s221 + $0xe0] sm:$0xff] %v590
        %1117 = vst [vmem:[%s221 + $0xe8] sm:$0xff] %v595
        %1118 = vst [vmem:[%s221 + $0xf0] sm:$0xff] %v600
        %1119 = vst [vmem:[%s221 + $0xf8] sm:$0xff] %v605
        %1120 = vst [vmem:[%s221 + $0x100] sm:$0xff] %v610
        %1121 = vst [vmem:[%s221 + $0x108] sm:$0xff] %v615
        %1122 = vst [vmem:[%s221 + $0x110] sm:$0xff] %v620
        %1123 = vst [vmem:[%s221 + $0x118] sm:$0xff] %v625
        %1124 = vst [vmem:[%s221 + $0x120] sm:$0xff] %v630
        %1125 = vst [vmem:[%s221 + $0x128] sm:$0xff] %v635
        %1126 = vst [vmem:[%s221 + $0x130] sm:$0xff] %v640
        %1127 = vst [vmem:[%s221 + $0x138] sm:$0xff] %v645
        %1128 = vst [vmem:[%s221 + $0x140] sm:$0xff] %v650
        %1129 = vst [vmem:[%s221 + $0x148] sm:$0xff] %v655
        %1130 = vst [vmem:[%s221 + $0x150] sm:$0xff] %v660
        %1131 = vst [vmem:[%s221 + $0x158] sm:$0xff] %v665
        %1132 = vst [vmem:[%s221 + $0x160] sm:$0xff] %v670
        %1133 = vst [vmem:[%s221 + $0x168] sm:$0xff] %v675
        %1134 = vst [vmem:[%s221 + $0x170] sm:$0xff] %v680
        %1135 = vst [vmem:[%s221 + $0x178] sm:$0xff] %v685
        %1136 = vst [vmem:[%s221 + $0x180] sm:$0xff] %v690
        %1137 = vst [vmem:[%s221 + $0x188] sm:$0xff] %v695
        %1138 = vst [vmem:[%s221 + $0x190] sm:$0xff] %v700
        %1139 = vst [vmem:[%s221 + $0x198] sm:$0xff] %v705
        %1140 = vst [vmem:[%s221 + $0x1a0] sm:$0xff] %v710
        %1141 = vst [vmem:[%s221 + $0x1a8] sm:$0xff] %v715
        %1142 = vst [vmem:[%s221 + $0x1b0] sm:$0xff] %v720
        %1143 = vst [vmem:[%s221 + $0x1b8] sm:$0xff] %v725
        %1144 = vst [vmem:[%s221 + $0x1c0] sm:$0xff] %v730
        %1145 = vst [vmem:[%s221 + $0x1c8] sm:$0xff] %v735
        %1146 = vst [vmem:[%s221 + $0x1d0] sm:$0xff] %v740
        %1147 = vst [vmem:[%s221 + $0x1d8] sm:$0xff] %v745
        %1148 = vst [vmem:[%s221 + $0x1e0] sm:$0xff] %v750
        %1149 = vst [vmem:[%s221 + $0x1e8] sm:$0xff] %v755
        %1150 = vst [vmem:[%s221 + $0x1f0] sm:$0xff] %v760
        %1151 = vst [vmem:[%s221 + $0x1f8] sm:$0xff] %v765
        %1152 = vst [vmem:[%s221 + $0x200] sm:$0xff] %v770
        %1153 = vst [vmem:[%s221 + $0x208] sm:$0xff] %v775
        %1154 = vst [vmem:[%s221 + $0x210] sm:$0xff] %v780
        %1155 = vst [vmem:[%s221 + $0x218] sm:$0xff] %v785
        %1156 = vst [vmem:[%s221 + $0x220] sm:$0xff] %v790
        %1157 = vst [vmem:[%s221 + $0x228] sm:$0xff] %v795
        %1158 = vst [vmem:[%s221 + $0x230] sm:$0xff] %v800
        %1159 = vst [vmem:[%s221 + $0x238] sm:$0xff] %v805
        %1160 = vst [vmem:[%s221 + $0x240] sm:$0xff] %v810
        %1161 = vst [vmem:[%s221 + $0x248] sm:$0xff] %v815
        %1162 = vst [vmem:[%s221 + $0x250] sm:$0xff] %v820
        %1163 = vst [vmem:[%s221 + $0x258] sm:$0xff] %v825
        %1164 = vst [vmem:[%s221 + $0x260] sm:$0xff] %v830
        %1165 = vst [vmem:[%s221 + $0x268] sm:$0xff] %v835
        %1166 = vst [vmem:[%s221 + $0x270] sm:$0xff] %v840
        %1167 = vst [vmem:[%s221 + $0x278] sm:$0xff] %v845
        %1168 = vst [vmem:[%s221 + $0x280] sm:$0xff] %v850
        %1169 = vst [vmem:[%s221 + $0x288] sm:$0xff] %v855
        %1170 = vst [vmem:[%s221 + $0x290] sm:$0xff] %v860
        %1171 = vst [vmem:[%s221 + $0x298] sm:$0xff] %v865
        %1172 = vst [vmem:[%s221 + $0x2a0] sm:$0xff] %v870
        %1173 = vst [vmem:[%s221 + $0x2a8] sm:$0xff] %v875
        %1174 = vst [vmem:[%s221 + $0x2b0] sm:$0xff] %v880
        %1175 = vst [vmem:[%s221 + $0x2b8] sm:$0xff] %v885
        %1176 = vst [vmem:[%s221 + $0x2c0] sm:$0xff] %v890
        %1177 = vst [vmem:[%s221 + $0x2c8] sm:$0xff] %v895
        %1178 = vst [vmem:[%s221 + $0x2d0] sm:$0xff] %v900
        %1179 = vst [vmem:[%s221 + $0x2d8] sm:$0xff] %v905
        %1180 = vst [vmem:[%s221 + $0x2e0] sm:$0xff] %v910
        %1181 = vst [vmem:[%s221 + $0x2e8] sm:$0xff] %v915
        %1182 = vst [vmem:[%s221 + $0x2f0] sm:$0xff] %v920
        %1183 = vst [vmem:[%s221 + $0x2f8] sm:$0xff] %v925
        %1184 = vst [vmem:[%s221 + $0x300] sm:$0xff] %v930
        %1185 = vst [vmem:[%s221 + $0x308] sm:$0xff] %v935
        %1186 = vst [vmem:[%s221 + $0x310] sm:$0xff] %v940
        %1187 = vst [vmem:[%s221 + $0x318] sm:$0xff] %v945
        %1188 = vst [vmem:[%s221 + $0x320] sm:$0xff] %v950
        %1189 = vst [vmem:[%s221 + $0x328] sm:$0xff] %v955
        %1190 = vst [vmem:[%s221 + $0x330] sm:$0xff] %v960
        %1191 = vst [vmem:[%s221 + $0x338] sm:$0xff] %v965
        %1192 = vst [vmem:[%s221 + $0x340] sm:$0xff] %v970
        %1193 = vst [vmem:[%s221 + $0x348] sm:$0xff] %v975
        %1194 = vst [vmem:[%s221 + $0x350] sm:$0xff] %v980
        %1195 = vst [vmem:[%s221 + $0x358] sm:$0xff] %v985
        %1196 = vst [vmem:[%s221 + $0x360] sm:$0xff] %v990
        %1197 = vst [vmem:[%s221 + $0x368] sm:$0xff] %v995
        %1198 = vst [vmem:[%s221 + $0x370] sm:$0xff] %v1000
        %1199 = vst [vmem:[%s221 + $0x378] sm:$0xff] %v1005
        %1200 = vst [vmem:[%s221 + $0x380] sm:$0xff] %v1010
        %1201 = vst [vmem:[%s221 + $0x388] sm:$0xff] %v1015
        %1202 = vst [vmem:[%s221 + $0x390] sm:$0xff] %v1020
        %1203 = vst [vmem:[%s221 + $0x398] sm:$0xff] %v1025
        %1204 = vst [vmem:[%s221 + $0x3a0] sm:$0xff] %v1030
        %1205 = vst [vmem:[%s221 + $0x3a8] sm:$0xff] %v1035
        %1206 = vst [vmem:[%s221 + $0x3b0] sm:$0xff] %v1040
        %1207 = vst [vmem:[%s221 + $0x3b8] sm:$0xff] %v1045
        %1208 = vst [vmem:[%s221 + $0x3c0] sm:$0xff] %v1050
        %1209 = vst [vmem:[%s221 + $0x3c8] sm:$0xff] %v1055
        %1210 = vst [vmem:[%s221 + $0x3d0] sm:$0xff] %v1060
        %1211 = vst [vmem:[%s221 + $0x3d8] sm:$0xff] %v1065
        %1212 = vst [vmem:[%s221 + $0x3e0] sm:$0xff] %v1070
        %1213 = vst [vmem:[%s221 + $0x3e8] sm:$0xff] %v1075
        %1214 = vst [vmem:[%s221 + $0x3f0] sm:$0xff] %v1080
        %1215 = vst [vmem:[%s221 + $0x3f8] sm:$0xff] %v1085
        %s1216 = sand.u32 %s97, 1
        %s1217 = scalar_lea.sflag [#allocation4], %s1216
        %s1218 = sand.u32 %s97, 1
        %s1219 = smul.addr %s1218, 1024
        %s1220 = scalar_lea.vmem [#allocation8], %s1219
        // Predicated region
        $region45: #{tpu_custom_call.1} parent=31 // pred_check
          %p1221 = pneg %p107
        $region46: #{tpu_custom_call.1} parent=31 // pred_check_branch
          %1223 = sbr.rel (%p1221) target = $region48
        $region47: #{tpu_custom_call.1} parent=31 // pred_region
          %s1224 = smul.u32 128, %s21
          %s1225 = ssub.s32 313, %s1224
          %p1226 = scmp.lt.s32.totalorder %s1225, 128
          %s1227 = scalar_select %p1226, %s1225, 128
          %s1228 = smul.u32 128, %s1227
          %s1230 = ssub.s32 16384, %s1228
          %1231 = vsyncadd %s1217, %s1230
          %p1232 = scmp.ne.s32.totalorder 0, %s1228
          %s1233 = smul.addr %s1224, 128
          %s1234 = scalar_lea.hbm %s3, %s1233
          %s1235 = smul.u32 8, %s1227
          %s1236 = sshll.u32 %s1220, 4
          %s1237 = int_to_ptr.vmem [resolvable:$true] %s1236
          %s1238 = sshll.u32 %s1235, 4
          %1242 = dma.vmem_to_hbm [thread:$0]  (%p1232), %s1237, %s1238, %s1234, %s1217, 128, 128, 8
        $region48: #{tpu_custom_call.1} parent=31 // pred_fallthru
          _
      $region32: #{tpu_custom_call.1} parent=5 // pred_fallthru
        _
      %p1243 = scmp.le.s32.totalorder 2, %s16
      // Predicated region
      $region49: #{tpu_custom_call.1} parent=5 // pred_check
        %p1244 = pneg %p1243
      $region50: #{tpu_custom_call.1} parent=5 // pred_check_branch
        %1246 = sbr.rel (%p1244) target = $region52
      $region51: #{tpu_custom_call.1} parent=5 // pred_region
        %s1247 = ssub.s32 %s16, 2
        // Predicated region
        $region53: #{tpu_custom_call.1} parent=51 // pred_check
          %p1248 = pneg %p113
        $region54: #{tpu_custom_call.1} parent=51 // pred_check_branch
          %1250 = sbr.rel (%p1248) target = $region56
        $region55: #{tpu_custom_call.1} parent=51 // pred_region
          %s1251 = sand.u32 %s98, 1
          %s1252 = scalar_lea.sflag [#allocation4], %s1251
          %s1253 = sand.u32 %s98, 1
          %s1254 = smul.addr %s1253, 1024
          %s1255 = scalar_lea.vmem [#allocation8], %s1254
          %1256 = dma.done %s1252, 16384
        $region56: #{tpu_custom_call.1} parent=51 // pred_fallthru
          _
      $region52: #{tpu_custom_call.1} parent=5 // pred_fallthru
        _
    $region6: #{tpu_custom_call.1} parent=1 // loop_footer
      %s20 = sadd.s32 1, %s16
    $region7: #{tpu_custom_call.1} parent=1 // loop_footer_branch
      %15 = sbr.rel target = $region3
    $region8: #{tpu_custom_call.1} parent=1 // loop_exit
      _
    %1257 = vsyncpa [#allocation3], 1
    %s1258 = scalar_lea.sflag [#allocation3], 1
    %1259 = vsyncpa %s1258, 1
    %1260 = vsyncpa [#allocation6], 1
    %1261 = vsyncpa [#allocation4], 1
    %s1262 = scalar_lea.sflag [#allocation4], 1
    %1263 = vsyncpa %s1262, 1

</llo_original>
